<compile_context>
chip_gen: v6e
topology: v6e:2x2x1
jax: 0.10.0
libtpu: 0.0.40
codegen_flags: <defaults>
</compile_context>

<pallas_src>
import functools

import jax
import jax.numpy as jnp
from jax import lax
from jax.experimental import pallas as pl
from jax.experimental.pallas import tpu as pltpu

GLOVE_DIM = 128     # glove_embedding_dim (lane axis, multiple of 128)
VOCAB = 128         # synthetic word_dict size
MAX_TILE = 1024     # max tokens per grid step (review: 512-2048; 1 MiB dbl-buf out)
DROPOUT_P = 0.4


def _choose_tile(n_tokens, max_tile=MAX_TILE):
    """Tokens per grid step: as large as possible to amortize per-step overhead,
    but keep >=2 grid steps when there is enough work so the "parallel" grid
    axis can be sharded across both v7x TensorCores."""
    n128 = -(-n_tokens // 128)            # 128-token chunks after padding
    if n128 <= 1:
        return 128
    units = max(1, min(max_tile // 128, n128 // 2))
    return 128 * units


def _embed_kernel(*refs, vocab, tile, keep_thr, inv_keep, training):
    """One grid step: embed `tile` tokens via a two-hot bf16 MXU matmul
    (exact f32 hi+lo reconstruction), then optional fused inverted dropout."""
    if training:
        ids_ref, tab_ref, bits_ref, out_ref = refs
    else:
        ids_ref, tab_ref, out_ref = refs

    ids = ids_ref[0]                                          # (1, tile) int32, lane-dense
    # twohot[v, t] = 1 iff v == ids[t] (hi half) or v == ids[t] + vocab (lo half).
    # Built directly in (2V, tile) orientation so the lane-dense id row
    # broadcasts with no relayout; values are exactly 0/1 in bf16.
    iota = lax.broadcasted_iota(jnp.int32, (2 * vocab, tile), 0)
    twohot = ((iota == ids) | (iota == ids + vocab)).astype(jnp.bfloat16)

    # (tile, D) f32 = twohot^T @ [hi; lo].  Contraction on dim 0 of both
    # operands -> lhs-transposed MXU path; K = 2V fills the 256-deep MXU on
    # v6e/v7x; f32 accumulation makes hi + lo an (almost) exact f32 gather.
    acc = lax.dot_general(
        twohot, tab_ref[...],
        dimension_numbers=(((0,), (0,)), ((), ())),
        preferred_element_type=jnp.float32)

    if training:
        # Inverted dropout, p = 1 - keep_prob: one int32 compare + one select.
        keep = bits_ref[...] < jnp.int32(keep_thr)
        acc = jnp.where(keep, acc * inv_keep, 0.0)

    out_ref[...] = acc.astype(out_ref.dtype)


def fused_embed_dropout(flat_ids, table, *, training=False, dropout_p=DROPOUT_P,
                        rng_key=None, out_dtype=None):
    """Embedding lookup (+ optional fused dropout) over a flat token stream.

    flat_ids: (N,) integer ids.  Returns (N_padded, D); caller slices to N.
    """
    (n_tok,) = flat_ids.shape
    V, D = table.shape
    assert D % 128 == 0, "embedding dim must be lane-aligned"
    # VMEM-resident hi/lo table (2V x D bf16) -- only valid for small vocabs.
    assert 2 * V * D * 2 <= 8 * 2 ** 20, \
        "embedding table too large for the VMEM-resident design (see TODO)"
    out_dtype = table.dtype if out_dtype is None else out_dtype

    tile = _choose_tile(n_tok)
    n_tiles = -(-n_tok // tile)
    n_pad = n_tiles * tile

    ids = flat_ids.astype(jnp.int32)
    if n_pad != n_tok:
        ids = jnp.concatenate([ids, jnp.zeros((n_pad - n_tok,), jnp.int32)])
    # Lane-dense id layout: one contiguous (1, 1, tile) row DMA per grid step.
    ids3 = ids.reshape(n_tiles, 1, tile)

    # Exact(ish) f32 gather from a single bf16 MXU pass over K = 2V:
    #   table = hi + lo,  hi = bf16(table),  lo = bf16(table - hi).
    hi = table.astype(jnp.bfloat16)
    lo = (table - hi.astype(jnp.float32)).astype(jnp.bfloat16)
    tab_cat = jnp.concatenate([hi, lo], axis=0)               # (2V, D) bf16

    apply_dropout = bool(training) and dropout_p > 0.0
    keep_prob = 1.0 - dropout_p
    keep_thr = min(int(round(keep_prob * 2 ** 32)) - 2 ** 31, 2 ** 31 - 1)

    kernel = functools.partial(
        _embed_kernel, vocab=V, tile=tile, keep_thr=keep_thr,
        inv_keep=1.0 / keep_prob, training=apply_dropout)

    in_specs = [
        pl.BlockSpec((1, 1, tile), lambda i: (i, 0, 0)),      # ids, lane-dense
        # Grid-invariant block index -> the hi/lo table stays resident across
        # the grid (never re-fetched); at 256x128 bf16 it is only 64 KiB.
        pl.BlockSpec((2 * V, D), lambda i: (0, 0)),
    ]
    args = [ids3, tab_cat]

    bytes_accessed = n_pad * 4 + 2 * V * D * 2 + n_pad * D * jnp.dtype(out_dtype).itemsize
    if apply_dropout:
        assert rng_key is not None, "training mode needs an rng_key"
        bits_u32 = jax.random.bits(rng_key, (n_pad, D), jnp.uint32)
        bits = jax.lax.bitcast_convert_type(bits_u32, jnp.int32)
        in_specs.append(pl.BlockSpec((tile, D), lambda i: (i, 0)))
        args.append(bits)
        bytes_accessed += n_pad * D * 4

    cost = pl.CostEstimate(
        flops=2 * n_pad * (2 * V) * D,
        transcendentals=0,
        bytes_accessed=bytes_accessed)

    return pl.pallas_call(
        kernel,
        out_shape=jax.ShapeDtypeStruct((n_pad, D), out_dtype),
        grid_spec=pltpu.PrefetchScalarGridSpec(
            num_scalar_prefetch=0,
            grid=(n_tiles,),
            in_specs=in_specs,
            out_specs=pl.BlockSpec((tile, D), lambda i: (i, 0)),
        ),
        cost_estimate=cost,
        compiler_params=pltpu.CompilerParams(
            # Disjoint output tiles, no carried state -> "parallel" lets v7x
            # shard the grid across both TensorCores.
            dimension_semantics=("parallel",)),
    )(*args)


def pretrained_data_layers_forward(inputs, table, *, training=False, rng_key=None):
    """Mirror of PretrainedDataLayers.forward (use_cove=False).

    All 7 token-id tensors are embedded by ONE fused pallas_call over the
    concatenated flat token stream; masks pass through unchanged.
    """
    id_tensors = inputs[0::2]
    masks = inputs[1::2]
    _, D = table.shape

    shapes = [x.shape for x in id_tensors]
    flats = [x.reshape(-1).astype(jnp.int32) for x in id_tensors]
    sizes = [int(f.shape[0]) for f in flats]
    stream = jnp.concatenate(flats)

    out_flat = fused_embed_dropout(stream, table, training=training, rng_key=rng_key)

    outs, off = [], 0
    for shp, sz in zip(shapes, sizes):
        outs.append(out_flat[off:off + sz].reshape(*shp, D))
        off += sz

    result = []
    for emb, m in zip(outs, masks):
        result.extend([emb, m])
    return result


def _make_ids(key, shape, vocab):
    ids = jax.random.randint(key, shape, 0, vocab, dtype=jnp.int32)
    ids = ids.at[:, -1].set(0)      # force some padding tokens (id 0)
    return ids


if __name__ == "__main__":
    key = jax.random.PRNGKey(0)
    (k_tab, k_drop, k_p, k_q, k_qi,
     k_a1, k_a2, k_qa1, k_qa2) = jax.random.split(key, 9)

    # Deterministic embedding table; row 0 zeroed (padding_idx=0).
    table = jax.random.normal(k_tab, (VOCAB, GLOVE_DIM), dtype=jnp.float32) * 0.1
    table = table.at[0].set(0.0)

    B = 2
    passage      = _make_ids(k_p,   (B, 48), VOCAB)
    question     = _make_ids(k_q,   (B, 16), VOCAB)
    questioninfo = _make_ids(k_qi,  (B, 16), VOCAB)
    answer1      = _make_ids(k_a1,  (B, 16), VOCAB)
    answer2      = _make_ids(k_a2,  (B, 16), VOCAB)
    qanswer1     = _make_ids(k_qa1, (B, 16), VOCAB)
    qanswer2     = _make_ids(k_qa2, (B, 16), VOCAB)

    def mask(x):   # 1 where padding, same convention as x_mask in the module
        return (x == 0).astype(jnp.int32)

    inputs = [passage, mask(passage), question, mask(question),
              questioninfo, mask(questioninfo), answer1, mask(answer1),
              answer2, mask(answer2), qanswer1, mask(qanswer1),
              qanswer2, mask(qanswer2)]

    # --- eval mode (dropout = identity, matches torch eval) ------------------
    outputs = pretrained_data_layers_forward(inputs, table, training=False)
    outputs = jax.block_until_ready(outputs)

    for emb_out, ids in zip(outputs[0::2], inputs[0::2]):
        ref = jnp.take(table, ids, axis=0)
        assert emb_out.shape == ids.shape + (GLOVE_DIM,)
        # 2e-5 abs tolerance covers the bf16 hi/lo reconstruction (<= |x|*2^-16).
        assert jnp.allclose(emb_out, ref, atol=2e-5), "Pallas embedding gather mismatch"
    for m_out, m_in in zip(outputs[1::2], inputs[1::2]):
        assert jnp.array_equal(m_out, m_in)

    # --- training mode (fused inverted dropout, p=0.4) ------------------------
    train_out = pretrained_data_layers_forward(inputs, table, training=True,
                                               rng_key=k_drop)
    train_out = jax.block_until_ready(train_out)
    for emb_out, ids in zip(train_out[0::2], inputs[0::2]):
        ref = jnp.take(table, ids, axis=0) / (1.0 - DROPOUT_P)
        dropped = jnp.abs(emb_out) < 1e-7
        kept_ok = jnp.abs(emb_out - ref) < 1e-4
        assert emb_out.shape == ids.shape + (GLOVE_DIM,)
        assert bool(jnp.all(dropped | kept_ok)), "dropout output not in {0, x/keep_prob}"

    # Loose keep-rate sanity check on the largest tensor (passage).
    ref_p = jnp.take(table, passage, axis=0)
    nz = jnp.abs(ref_p) > 1e-7
    kept = (jnp.abs(train_out[0]) > 1e-7) & nz
    keep_rate = jnp.sum(kept) / jnp.maximum(jnp.sum(nz), 1)
    assert 0.5 < float(keep_rate) < 0.7, f"dropout keep rate off: {float(keep_rate)}"

    print("KERNEL_OK")
</pallas_src>

<mosaic_0001>
module attributes {stable_mosaic.version = 11 : i64} {
  func.func @_embed_kernel(%arg0: i32, %arg1: memref<1x1x128xi32, #tpu.memory_space<vmem>>, %arg2: memref<256x128xbf16, #tpu.memory_space<vmem>>, %arg3: memref<128x128xf32, #tpu.memory_space<vmem>>) attributes {dimension_semantics = [#tpu.dimension_semantics<parallel>], iteration_bounds = array<i64: 3>, scalar_prefetch = 0 : i64, scratch_operands = 0 : i64, tpu.core_type = #tpu.core_type<tc>, window_params = [{transform_indices = @transform_0, window_bounds = array<i64: 1, 1, 128>}, {pipeline_mode = #tpu.pipeline_mode<synchronous>, transform_indices = @transform_1, window_bounds = array<i64: 256, 128>}, {transform_indices = @transform_2, window_bounds = array<i64: 128, 128>}]} {
    %c0 = arith.constant 0 : index
    %c0_0 = arith.constant 0 : index
    %c0_1 = arith.constant 0 : index
    %0 = vector.load %arg1[%c0, %c0_0, %c0_1] : memref<1x1x128xi32, #tpu.memory_space<vmem>>, vector<1x1x128xi32>
    %1 = vector.shape_cast %0 : vector<1x1x128xi32> to vector<1x128xi32>
    %2 = tpu.iota {dimensions = array<i32: 0>} : vector<256x128xi32>
    %3 = vector.broadcast %1 : vector<1x128xi32> to vector<256x128xi32>
    %4 = arith.cmpi eq, %2, %3 : vector<256x128xi32>
    %c128_i32 = arith.constant 128 : i32
    %5 = vector.broadcast %c128_i32 : i32 to vector<1x128xi32>
    %6 = arith.addi %1, %5 : vector<1x128xi32>
    %7 = vector.broadcast %6 : vector<1x128xi32> to vector<256x128xi32>
    %8 = arith.cmpi eq, %2, %7 : vector<256x128xi32>
    %9 = arith.ori %4, %8 : vector<256x128xi1>
    %10 = arith.extui %9 : vector<256x128xi1> to vector<256x128xi32>
    %11 = arith.sitofp %10 : vector<256x128xi32> to vector<256x128xf32>
    %12 = arith.truncf %11 : vector<256x128xf32> to vector<256x128xbf16>
    %c0_2 = arith.constant 0 : index
    %c0_3 = arith.constant 0 : index
    %13 = vector.load %arg2[%c0_2, %c0_3] : memref<256x128xbf16, #tpu.memory_space<vmem>>, vector<256x128xbf16>
    %cst = arith.constant dense<0.000000e+00> : vector<128x128xf32>
    %14 = tpu.matmul %12, %13, %cst {dimension_numbers = #tpu.dot_dimension_numbers<[0], [0], [1], [1], [0, 1, 1, 1], [], []>} : vector<256x128xbf16>, vector<256x128xbf16>, vector<128x128xf32> -> vector<128x128xf32>
    %c0_4 = arith.constant 0 : index
    %c0_5 = arith.constant 0 : index
    %15 = vector.load %arg3[%c0_4, %c0_5] : memref<128x128xf32, #tpu.memory_space<vmem>>, vector<128x128xf32>
    tpu.vector_store %arg3[%c0_4, %c0_5], %14 {strides = array<i32>} : memref<128x128xf32, #tpu.memory_space<vmem>>, vector<128x128xf32>,
    return
  }
  func.func @transform_0(%arg0: i32) -> (i32, i32, i32) {
    %c0_i32 = arith.constant 0 : i32
    %c0_i32_0 = arith.constant 0 : i32
    %c0_i32_1 = arith.constant 0 : i32
    return %arg0, %c0_i32, %c0_i32_0 : i32, i32, i32
  }
  func.func @transform_1(%arg0: i32) -> (i32, i32) {
    %c0_i32 = arith.constant 0 : i32
    %c0_i32_0 = arith.constant 0 : i32
    %c0_i32_1 = arith.constant 0 : i32
    return %c0_i32, %c0_i32_0 : i32, i32
  }
  func.func @transform_2(%arg0: i32) -> (i32, i32) {
    %c0_i32 = arith.constant 0 : i32
    %c0_i32_0 = arith.constant 0 : i32
    return %arg0, %c0_i32 : i32, i32
  }
}

</mosaic_0001>

<llo_original>
// kernel: tpu_custom_call.1
$region0: #{tpu_custom_call.1}
  #allocation0 [shape = 'u32[]', space=smem, size = 0x4, offset = 0x4, fixed_abs, tag = 'smem constant byte address 0x4 - core index']
  #allocation1 [shape = 'u32[144,128]{1,0:T(1,128)}', space=vmem, size = 0x12000, scoped, tag = 'internal scratch']
  %s0 = inlined_call_operand.hbm [shape: s32[3,1,128], index: 0, kind: input, shape index: {}]
  %s1 = inlined_call_operand.hbm [shape: bf16[256,128], index: 1, kind: input, shape index: {}]
  %s2 = inlined_call_operand.hbm [shape: f32[384,128], index: 2, kind: output, shape index: {}]
  %s3 = sld [smem:[#allocation0]]
  $region49: #{tpu_custom_call.1} parent=0
    _
  %s5 = ssub.s32 1, %s3
  %s6 = scalar_select 0, %s5, %s3
  $region1: #{tpu_custom_call.1} parent=0
    #allocation2 [shape = 'u8[1024]{0}', space=vmem, size = 0x400, scoped, tag = 'input window, operand 0']
    #allocation3 [shape = 's32[2]{0}', space=sflag, size = 0x8, scoped, tag = 'scoped memory for tpu_custom_call.1']
    #allocation4 [shape = 's32[2]{0}', space=sflag, size = 0x8, scoped, tag = 'scoped memory for tpu_custom_call.1']
    #allocation5 [shape = 'u8[65536]{0}', space=vmem, size = 0x10000, scoped, tag = 'input window, operand 1, single buffered']
    #allocation6 [shape = 's32[1]{0}', space=sflag, size = 0x4, scoped, tag = 'scoped memory for tpu_custom_call.1']
    #allocation7 [shape = 'u8[131072]{0}', space=vmem, size = 0x20000, scoped, tag = 'output window, operand 0']
    %7 = vsyncpa [#allocation3], 0
    %s8 = scalar_lea.sflag [#allocation3], 1
    %9 = vsyncpa %s8, 0
    %10 = vsyncpa [#allocation6], 0
    %11 = vsyncpa [#allocation4], 0
    %s12 = scalar_lea.sflag [#allocation4], 1
    %13 = vsyncpa %s12, 0
    loop: start=0, step=1, limit=5
    $region2: #{tpu_custom_call.1} parent=1 // loop_pre_header
      _
    $region3: #{tpu_custom_call.1} parent=1 // loop_header
      %s15 = sphi 0, %s19
      %p16 = scmp.ge.s32.totalorder %s15, 5
      %s25 = sphi 0, %s27
      %s28 = sphi 0, %s25
      %s29 = sphi 0, %s28
      %s45 = sphi 0, %s29
      %s49 = sphi 0, %s49
      %s51 = sphi 0, %s49
      %s52 = sphi 0, %s51
      %s66 = sphi 0, %s52
      %s72 = sphi 0, %s74
      %s75 = sphi 0, %s72
      %s76 = sphi 0, %s75
      %s92 = sphi 0, %s76
    $region4: #{tpu_custom_call.1} parent=1 // loop_header_branch
      %18 = sbr.rel (%p16) target = $region8
    $region5: #{tpu_custom_call.1} parent=1 // loop_body
      %s20 = ssub.s32 %s15, 1
      %s21 = ssub.s32 %s15, 2
      %s22 = sadd.s32 %s15, 1
      %s23 = ssub.s32 %s15, %s22
      %p24 = scmp.eq.s32.totalorder %s23, 0
      %s26 = sadd.s32 %s25, 1
      %s27 = scalar_select %p24, %s25, %s26
      %p30 = pneg %p24
      %p31 = scmp.eq.s32.totalorder %s15, 2
      %p32 = por %p30, %p31
      %p33 = scmp.ne.s32.totalorder %s25, %s28
      %p34 = scmp.eq.s32.totalorder %s15, 0
      %p35 = por %p33, %p34
      %p36 = scmp.ne.s32.totalorder %s25, %s28
      %p37 = scmp.eq.s32.totalorder %s20, 2
      %p38 = por %p36, %p37
      %p39 = scmp.ne.s32.totalorder %s28, %s29
      %p40 = scmp.eq.s32.totalorder %s20, 0
      %p41 = por %p39, %p40
      %p42 = scmp.ne.s32.totalorder %s28, %s29
      %p43 = scmp.eq.s32.totalorder %s21, 2
      %p44 = por %p42, %p43
      %p46 = scmp.ne.s32.totalorder %s29, %s45
      %p47 = scmp.eq.s32.totalorder %s21, 0
      %p48 = por %p46, %p47
      %s50 = sadd.s32 %s49, 1
      %p53 = scmp.eq.s32.totalorder %s15, 2
      %p54 = scmp.ne.s32.totalorder %s49, %s51
      %p55 = scmp.eq.s32.totalorder %s15, 0
      %p56 = por %p54, %p55
      %p57 = scmp.ne.s32.totalorder %s49, %s51
      %p58 = scmp.eq.s32.totalorder %s20, 2
      %p59 = por %p57, %p58
      %p60 = scmp.ne.s32.totalorder %s51, %s52
      %p61 = scmp.eq.s32.totalorder %s20, 0
      %p62 = por %p60, %p61
      %p63 = scmp.ne.s32.totalorder %s51, %s52
      %p64 = scmp.eq.s32.totalorder %s21, 2
      %p65 = por %p63, %p64
      %p67 = scmp.ne.s32.totalorder %s52, %s66
      %p68 = scmp.eq.s32.totalorder %s21, 0
      %p69 = por %p67, %p68
      %s70 = ssub.s32 %s15, %s22
      %p71 = scmp.eq.s32.totalorder %s70, 0
      %s73 = sadd.s32 %s72, 1
      %s74 = scalar_select %p71, %s72, %s73
      %p77 = pneg %p71
      %p78 = scmp.eq.s32.totalorder %s15, 2
      %p79 = por %p77, %p78
      %p80 = scmp.ne.s32.totalorder %s72, %s75
      %p81 = scmp.eq.s32.totalorder %s15, 0
      %p82 = por %p80, %p81
      %p83 = scmp.ne.s32.totalorder %s72, %s75
      %p84 = scmp.eq.s32.totalorder %s20, 2
      %p85 = por %p83, %p84
      %p86 = scmp.ne.s32.totalorder %s75, %s76
      %p87 = scmp.eq.s32.totalorder %s20, 0
      %p88 = por %p86, %p87
      %p89 = scmp.ne.s32.totalorder %s75, %s76
      %p90 = scmp.eq.s32.totalorder %s21, 2
      %p91 = por %p89, %p90
      %p93 = scmp.ne.s32.totalorder %s76, %s92
      %p94 = scmp.eq.s32.totalorder %s21, 0
      %p95 = por %p93, %p94
      %p96 = scmp.le.s32.totalorder 1, %s15
      %p97 = scmp.lt.s32.totalorder %s15, 4
      %p98 = pnand %p96, %p97
      %p99 = pneg %p98
      // Predicated region
      $region9: #{tpu_custom_call.1} parent=5 // pred_check
        _
      $region10: #{tpu_custom_call.1} parent=5 // pred_check_branch
        %101 = sbr.rel (%p98) target = $region12
      $region11: #{tpu_custom_call.1} parent=5 // pred_region
        %s102 = ssub.s32 %s15, 1
        // Predicated region
        $region13: #{tpu_custom_call.1} parent=11 // pred_check
          %p103 = pneg %p62
        $region14: #{tpu_custom_call.1} parent=11 // pred_check_branch
          %105 = sbr.rel (%p103) target = $region16
        $region15: #{tpu_custom_call.1} parent=11 // pred_region
          %s107 = ssub.s32 2048, 2048
          %108 = vsyncadd [#allocation6], %s107
          %s109 = sshll.u32 [#allocation5], 4
          %s110 = int_to_ptr.vmem [resolvable:$true] %s109
          %115 = dma.hbm_to_vmem [thread:$0]  %s1, 2048, %s110, [#allocation6], 64, 64, 4
        $region16: #{tpu_custom_call.1} parent=11 // pred_fallthru
          _
      $region12: #{tpu_custom_call.1} parent=5 // pred_fallthru
        _
      %p116 = scmp.lt.s32.totalorder %s15, 3
      // Predicated region
      $region17: #{tpu_custom_call.1} parent=5 // pred_check
        %p117 = pneg %p116
      $region18: #{tpu_custom_call.1} parent=5 // pred_check_branch
        %119 = sbr.rel (%p117) target = $region20
      $region19: #{tpu_custom_call.1} parent=5 // pred_region
        // Predicated region
        $region21: #{tpu_custom_call.1} parent=19 // pred_check
          %p120 = pneg %p35
        $region22: #{tpu_custom_call.1} parent=19 // pred_check_branch
          %122 = sbr.rel (%p120) target = $region24
        $region23: #{tpu_custom_call.1} parent=19 // pred_region
          %s123 = sand.u32 %s25, 1
          %s124 = scalar_lea.sflag [#allocation3], %s123
          %s125 = sand.u32 %s25, 1
          %s126 = scalar_lea.vmem [#allocation2], %s125
          %s128 = ssub.s32 16, 16
          %129 = vsyncadd %s124, %s128
          %s130 = smul.addr %s15, 16
          %s131 = scalar_lea.hbm %s0, %s130
          %s133 = sshll.u32 %s126, 4
          %s134 = int_to_ptr.vmem [resolvable:$true] %s133
          %136 = dma.hbm_to_vmem [thread:$0]  %s131, 16, %s134, %s124
        $region24: #{tpu_custom_call.1} parent=19 // pred_fallthru
          _
      $region20: #{tpu_custom_call.1} parent=5 // pred_fallthru
        _
      %p137 = scmp.le.s32.totalorder 1, %s15
      %p138 = scmp.lt.s32.totalorder %s15, 4
      %p139 = pnand %p137, %p138
      %p140 = pneg %p139
      // Predicated region
      $region25: #{tpu_custom_call.1} parent=5 // pred_check
        _
      $region26: #{tpu_custom_call.1} parent=5 // pred_check_branch
        %142 = sbr.rel (%p139) target = $region28
      $region27: #{tpu_custom_call.1} parent=5 // pred_region
        %s143 = ssub.s32 %s15, 1
        %s144 = sand.u32 %s28, 1
        %s145 = scalar_lea.sflag [#allocation3], %s144
        %s146 = sand.u32 %s28, 1
        %s147 = scalar_lea.vmem [#allocation2], %s146
        // Predicated region
        $region29: #{tpu_custom_call.1} parent=27 // pred_check
          %p148 = pneg %p41
        $region30: #{tpu_custom_call.1} parent=27 // pred_check_branch
          %150 = sbr.rel (%p148) target = $region32
        $region31: #{tpu_custom_call.1} parent=27 // pred_region
          %151 = dma.done %s145, 16
        $region32: #{tpu_custom_call.1} parent=27 // pred_fallthru
          _
        // Predicated region
        $region33: #{tpu_custom_call.1} parent=27 // pred_check
          %p152 = pneg %p62
        $region34: #{tpu_custom_call.1} parent=27 // pred_check_branch
          %154 = sbr.rel (%p152) target = $region36
        $region35: #{tpu_custom_call.1} parent=27 // pred_region
          %155 = dma.done [#allocation6], 2048
        $region36: #{tpu_custom_call.1} parent=27 // pred_fallthru
          _
        %s156 = sand.u32 %s28, 1
        %s157 = scalar_lea.sflag [#allocation3], %s156
        %s158 = sand.u32 %s28, 1
        %s159 = scalar_lea.vmem [#allocation2], %s158
        %p160 = pneg %p41
        %p161 = pneg %p38
        %p162 = pneg %p62
        %p163 = pneg %p59
        %p164 = pneg %p88
        %p165 = pneg %p85
        %s166 = sand.u32 %s75, 1
        %s167 = scalar_lea.sflag [#allocation4], %s166
        %s168 = sand.u32 %s75, 1
        %s169 = smul.addr %s168, 128
        %s170 = scalar_lea.vmem [#allocation7], %s169
        %s171 = smul.u32 16, %s20
        %v173 = vld [vmem:[%s147] sm:$0x1]
        %v174 = vlaneseq
        %v175 = vshrl.u32 %v174, 7
        %v176 = vadd.s32 %v175, 8
        %v177 = vadd.s32 %v175, 16
        %v178 = vadd.s32 %v175, 24
        %v179 = vadd.s32 %v175, 32
        %v180 = vadd.s32 %v175, 40
        %v181 = vadd.s32 %v175, 48
        %v182 = vadd.s32 %v175, 56
        %v183 = vadd.s32 %v175, 64
        %v184 = vadd.s32 %v175, 72
        %v185 = vadd.s32 %v175, 80
        %v186 = vadd.s32 %v175, 88
        %v187 = vadd.s32 %v175, 96
        %v188 = vadd.s32 %v175, 104
        %v189 = vadd.s32 %v175, 112
        %v190 = vadd.s32 %v175, 120
        %v191 = vadd.s32 %v175, 128
        %v192 = vadd.s32 %v175, 136
        %v193 = vadd.s32 %v175, 144
        %v194 = vadd.s32 %v175, 152
        %v195 = vadd.s32 %v175, 160
        %v196 = vadd.s32 %v175, 168
        %v197 = vadd.s32 %v175, 176
        %v198 = vadd.s32 %v175, 184
        %v199 = vadd.s32 %v175, 192
        %v200 = vadd.s32 %v175, 200
        %v201 = vadd.s32 %v175, 208
        %v202 = vadd.s32 %v175, 216
        %v203 = vadd.s32 %v175, 224
        %v204 = vadd.s32 %v175, 232
        %v205 = vadd.s32 %v175, 240
        %v206 = vadd.s32 %v175, 248
        %v207 = vlaneseq
        %v208 = vshrl.u32 %v207, 7
        %v209 = vsub.s32 0, %v208
        %v210 = vrot.slane %v173, %v209
        %vm211 = vcmp.eq.s32.totalorder %v175, %v210
        %vm212 = vcmp.eq.s32.totalorder %v176, %v210
        %vm213 = vcmp.eq.s32.totalorder %v177, %v210
        %vm214 = vcmp.eq.s32.totalorder %v178, %v210
        %vm215 = vcmp.eq.s32.totalorder %v179, %v210
        %vm216 = vcmp.eq.s32.totalorder %v180, %v210
        %vm217 = vcmp.eq.s32.totalorder %v181, %v210
        %vm218 = vcmp.eq.s32.totalorder %v182, %v210
        %vm219 = vcmp.eq.s32.totalorder %v183, %v210
        %vm220 = vcmp.eq.s32.totalorder %v184, %v210
        %vm221 = vcmp.eq.s32.totalorder %v185, %v210
        %vm222 = vcmp.eq.s32.totalorder %v186, %v210
        %vm223 = vcmp.eq.s32.totalorder %v187, %v210
        %vm224 = vcmp.eq.s32.totalorder %v188, %v210
        %vm225 = vcmp.eq.s32.totalorder %v189, %v210
        %vm226 = vcmp.eq.s32.totalorder %v190, %v210
        %vm227 = vcmp.eq.s32.totalorder %v191, %v210
        %vm228 = vcmp.eq.s32.totalorder %v192, %v210
        %vm229 = vcmp.eq.s32.totalorder %v193, %v210
        %vm230 = vcmp.eq.s32.totalorder %v194, %v210
        %vm231 = vcmp.eq.s32.totalorder %v195, %v210
        %vm232 = vcmp.eq.s32.totalorder %v196, %v210
        %vm233 = vcmp.eq.s32.totalorder %v197, %v210
        %vm234 = vcmp.eq.s32.totalorder %v198, %v210
        %vm235 = vcmp.eq.s32.totalorder %v199, %v210
        %vm236 = vcmp.eq.s32.totalorder %v200, %v210
        %vm237 = vcmp.eq.s32.totalorder %v201, %v210
        %vm238 = vcmp.eq.s32.totalorder %v202, %v210
        %vm239 = vcmp.eq.s32.totalorder %v203, %v210
        %vm240 = vcmp.eq.s32.totalorder %v204, %v210
        %vm241 = vcmp.eq.s32.totalorder %v205, %v210
        %vm242 = vcmp.eq.s32.totalorder %v206, %v210
        %v243 = vadd.s32 %v173, 128
        %v244 = vlaneseq
        %v245 = vshrl.u32 %v244, 7
        %v246 = vsub.s32 0, %v245
        %v247 = vrot.slane %v243, %v246
        %vm248 = vcmp.eq.s32.totalorder %v175, %v247
        %vm249 = vcmp.eq.s32.totalorder %v176, %v247
        %vm250 = vcmp.eq.s32.totalorder %v177, %v247
        %vm251 = vcmp.eq.s32.totalorder %v178, %v247
        %vm252 = vcmp.eq.s32.totalorder %v179, %v247
        %vm253 = vcmp.eq.s32.totalorder %v180, %v247
        %vm254 = vcmp.eq.s32.totalorder %v181, %v247
        %vm255 = vcmp.eq.s32.totalorder %v182, %v247
        %vm256 = vcmp.eq.s32.totalorder %v183, %v247
        %vm257 = vcmp.eq.s32.totalorder %v184, %v247
        %vm258 = vcmp.eq.s32.totalorder %v185, %v247
        %vm259 = vcmp.eq.s32.totalorder %v186, %v247
        %vm260 = vcmp.eq.s32.totalorder %v187, %v247
        %vm261 = vcmp.eq.s32.totalorder %v188, %v247
        %vm262 = vcmp.eq.s32.totalorder %v189, %v247
        %vm263 = vcmp.eq.s32.totalorder %v190, %v247
        %vm264 = vcmp.eq.s32.totalorder %v191, %v247
        %vm265 = vcmp.eq.s32.totalorder %v192, %v247
        %vm266 = vcmp.eq.s32.totalorder %v193, %v247
        %vm267 = vcmp.eq.s32.totalorder %v194, %v247
        %vm268 = vcmp.eq.s32.totalorder %v195, %v247
        %vm269 = vcmp.eq.s32.totalorder %v196, %v247
        %vm270 = vcmp.eq.s32.totalorder %v197, %v247
        %vm271 = vcmp.eq.s32.totalorder %v198, %v247
        %vm272 = vcmp.eq.s32.totalorder %v199, %v247
        %vm273 = vcmp.eq.s32.totalorder %v200, %v247
        %vm274 = vcmp.eq.s32.totalorder %v201, %v247
        %vm275 = vcmp.eq.s32.totalorder %v202, %v247
        %vm276 = vcmp.eq.s32.totalorder %v203, %v247
        %vm277 = vcmp.eq.s32.totalorder %v204, %v247
        %vm278 = vcmp.eq.s32.totalorder %v205, %v247
        %vm279 = vcmp.eq.s32.totalorder %v206, %v247
        %vm280 = vmor %vm211, %vm248
        %vm281 = vmor %vm212, %vm249
        %vm282 = vmor %vm213, %vm250
        %vm283 = vmor %vm214, %vm251
        %vm284 = vmor %vm215, %vm252
        %vm285 = vmor %vm216, %vm253
        %vm286 = vmor %vm217, %vm254
        %vm287 = vmor %vm218, %vm255
        %vm288 = vmor %vm219, %vm256
        %vm289 = vmor %vm220, %vm257
        %vm290 = vmor %vm221, %vm258
        %vm291 = vmor %vm222, %vm259
        %vm292 = vmor %vm223, %vm260
        %vm293 = vmor %vm224, %vm261
        %vm294 = vmor %vm225, %vm262
        %vm295 = vmor %vm226, %vm263
        %vm296 = vmor %vm227, %vm264
        %vm297 = vmor %vm228, %vm265
        %vm298 = vmor %vm229, %vm266
        %vm299 = vmor %vm230, %vm267
        %vm300 = vmor %vm231, %vm268
        %vm301 = vmor %vm232, %vm269
        %vm302 = vmor %vm233, %vm270
        %vm303 = vmor %vm234, %vm271
        %vm304 = vmor %vm235, %vm272
        %vm305 = vmor %vm236, %vm273
        %vm306 = vmor %vm237, %vm274
        %vm307 = vmor %vm238, %vm275
        %vm308 = vmor %vm239, %vm276
        %vm309 = vmor %vm240, %vm277
        %vm310 = vmor %vm241, %vm278
        %vm311 = vmor %vm242, %vm279
        %v312 = vsel %vm280, 1, 0
        %v313 = vsel %vm281, 1, 0
        %v314 = vsel %vm282, 1, 0
        %v315 = vsel %vm283, 1, 0
        %v316 = vsel %vm284, 1, 0
        %v317 = vsel %vm285, 1, 0
        %v318 = vsel %vm286, 1, 0
        %v319 = vsel %vm287, 1, 0
        %v320 = vsel %vm288, 1, 0
        %v321 = vsel %vm289, 1, 0
        %v322 = vsel %vm290, 1, 0
        %v323 = vsel %vm291, 1, 0
        %v324 = vsel %vm292, 1, 0
        %v325 = vsel %vm293, 1, 0
        %v326 = vsel %vm294, 1, 0
        %v327 = vsel %vm295, 1, 0
        %v328 = vsel %vm296, 1, 0
        %v329 = vsel %vm297, 1, 0
        %v330 = vsel %vm298, 1, 0
        %v331 = vsel %vm299, 1, 0
        %v332 = vsel %vm300, 1, 0
        %v333 = vsel %vm301, 1, 0
        %v334 = vsel %vm302, 1, 0
        %v335 = vsel %vm303, 1, 0
        %v336 = vsel %vm304, 1, 0
        %v337 = vsel %vm305, 1, 0
        %v338 = vsel %vm306, 1, 0
        %v339 = vsel %vm307, 1, 0
        %v340 = vsel %vm308, 1, 0
        %v341 = vsel %vm309, 1, 0
        %v342 = vsel %vm310, 1, 0
        %v343 = vsel %vm311, 1, 0
        %v344 = vcvt.s32.f32 %v312
        %v345 = vcvt.s32.f32 %v313
        %v346 = vcvt.s32.f32 %v314
        %v347 = vcvt.s32.f32 %v315
        %v348 = vcvt.s32.f32 %v316
        %v349 = vcvt.s32.f32 %v317
        %v350 = vcvt.s32.f32 %v318
        %v351 = vcvt.s32.f32 %v319
        %v352 = vcvt.s32.f32 %v320
        %v353 = vcvt.s32.f32 %v321
        %v354 = vcvt.s32.f32 %v322
        %v355 = vcvt.s32.f32 %v323
        %v356 = vcvt.s32.f32 %v324
        %v357 = vcvt.s32.f32 %v325
        %v358 = vcvt.s32.f32 %v326
        %v359 = vcvt.s32.f32 %v327
        %v360 = vcvt.s32.f32 %v328
        %v361 = vcvt.s32.f32 %v329
        %v362 = vcvt.s32.f32 %v330
        %v363 = vcvt.s32.f32 %v331
        %v364 = vcvt.s32.f32 %v332
        %v365 = vcvt.s32.f32 %v333
        %v366 = vcvt.s32.f32 %v334
        %v367 = vcvt.s32.f32 %v335
        %v368 = vcvt.s32.f32 %v336
        %v369 = vcvt.s32.f32 %v337
        %v370 = vcvt.s32.f32 %v338
        %v371 = vcvt.s32.f32 %v339
        %v372 = vcvt.s32.f32 %v340
        %v373 = vcvt.s32.f32 %v341
        %v374 = vcvt.s32.f32 %v342
        %v375 = vcvt.s32.f32 %v343
        %v376 = vpack.c.bf16 %v345, %v344
        %v377 = vpack.c.bf16 %v347, %v346
        %v378 = vpack.c.bf16 %v349, %v348
        %v379 = vpack.c.bf16 %v351, %v350
        %v380 = vpack.c.bf16 %v353, %v352
        %v381 = vpack.c.bf16 %v355, %v354
        %v382 = vpack.c.bf16 %v357, %v356
        %v383 = vpack.c.bf16 %v359, %v358
        %v384 = vpack.c.bf16 %v361, %v360
        %v385 = vpack.c.bf16 %v363, %v362
        %v386 = vpack.c.bf16 %v365, %v364
        %v387 = vpack.c.bf16 %v367, %v366
        %v388 = vpack.c.bf16 %v369, %v368
        %v389 = vpack.c.bf16 %v371, %v370
        %v390 = vpack.c.bf16 %v373, %v372
        %v391 = vpack.c.bf16 %v375, %v374
        %v392 = vld [vmem:[#allocation5] sm:$0xf]
        %v393 = vld [vmem:[#allocation5 + $0x4] sm:$0xf]
        %v394 = vld [vmem:[#allocation5 + $0x8] sm:$0xf]
        %v395 = vld [vmem:[#allocation5 + $0xc] sm:$0xf]
        %v396 = vld [vmem:[#allocation5 + $0x10] sm:$0xf]
        %v397 = vld [vmem:[#allocation5 + $0x14] sm:$0xf]
        %v398 = vld [vmem:[#allocation5 + $0x18] sm:$0xf]
        %v399 = vld [vmem:[#allocation5 + $0x1c] sm:$0xf]
        %v400 = vld [vmem:[#allocation5 + $0x20] sm:$0xf]
        %v401 = vld [vmem:[#allocation5 + $0x24] sm:$0xf]
        %v402 = vld [vmem:[#allocation5 + $0x28] sm:$0xf]
        %v403 = vld [vmem:[#allocation5 + $0x2c] sm:$0xf]
        %v404 = vld [vmem:[#allocation5 + $0x30] sm:$0xf]
        %v405 = vld [vmem:[#allocation5 + $0x34] sm:$0xf]
        %v406 = vld [vmem:[#allocation5 + $0x38] sm:$0xf]
        %v407 = vld [vmem:[#allocation5 + $0x3c] sm:$0xf]
        %v408 = vld [vmem:[#allocation5 + $0x40] sm:$0xf]
        %v409 = vld [vmem:[#allocation5 + $0x44] sm:$0xf]
        %v410 = vld [vmem:[#allocation5 + $0x48] sm:$0xf]
        %v411 = vld [vmem:[#allocation5 + $0x4c] sm:$0xf]
        %v412 = vld [vmem:[#allocation5 + $0x50] sm:$0xf]
        %v413 = vld [vmem:[#allocation5 + $0x54] sm:$0xf]
        %v414 = vld [vmem:[#allocation5 + $0x58] sm:$0xf]
        %v415 = vld [vmem:[#allocation5 + $0x5c] sm:$0xf]
        %v416 = vld [vmem:[#allocation5 + $0x60] sm:$0xf]
        %v417 = vld [vmem:[#allocation5 + $0x64] sm:$0xf]
        %v418 = vld [vmem:[#allocation5 + $0x68] sm:$0xf]
        %v419 = vld [vmem:[#allocation5 + $0x6c] sm:$0xf]
        %v420 = vld [vmem:[#allocation5 + $0x70] sm:$0xf]
        %v421 = vld [vmem:[#allocation5 + $0x74] sm:$0xf]
        %v422 = vld [vmem:[#allocation5 + $0x78] sm:$0xf]
        %v423 = vld [vmem:[#allocation5 + $0x7c] sm:$0xf]
        %424 = vxpose.xlu0.c.b16.start [1/8] %v376, 128
        %425 = vxpose.xlu0.c.b16.cont [2/8] %v377, 128
        %426 = vxpose.xlu0.c.b16.cont [3/8] %v378, 128
        %427 = vxpose.xlu0.c.b16.cont [4/8] %v379, 128
        %428 = vxpose.xlu0.c.b16.cont [5/8] %v380, 128
        %429 = vxpose.xlu0.c.b16.cont [6/8] %v381, 128
        %430 = vxpose.xlu0.c.b16.cont [7/8] %v382, 128
        %431 = vxpose.xlu0.c.b16.end [8/8] %v383, 128
        %v432 = vpop.trf.xlu0
        %v433 = vpop.trf.xlu0
        %v434 = vpop.trf.xlu0
        %v435 = vpop.trf.xlu0
        %v436 = vpop.trf.xlu0
        %v437 = vpop.trf.xlu0
        %v438 = vpop.trf.xlu0
        %v439 = vpop.trf.xlu0
        %440 = vxpose.xlu0.c.b16.start [1/8] %v384, 128
        %441 = vxpose.xlu0.c.b16.cont [2/8] %v385, 128
        %442 = vxpose.xlu0.c.b16.cont [3/8] %v386, 128
        %443 = vxpose.xlu0.c.b16.cont [4/8] %v387, 128
        %444 = vxpose.xlu0.c.b16.cont [5/8] %v388, 128
        %445 = vxpose.xlu0.c.b16.cont [6/8] %v389, 128
        %446 = vxpose.xlu0.c.b16.cont [7/8] %v390, 128
        %447 = vxpose.xlu0.c.b16.end [8/8] %v391, 128
        %v448 = vpop.trf.xlu0
        %v449 = vpop.trf.xlu0
        %v450 = vpop.trf.xlu0
        %v451 = vpop.trf.xlu0
        %v452 = vpop.trf.xlu0
        %v453 = vpop.trf.xlu0
        %v454 = vpop.trf.xlu0
        %v455 = vpop.trf.xlu0
        %v488 = vunpack.c.l.b16 %v392
        %v489 = vunpack.c.l.b16 %v393
        %v490 = vunpack.c.l.b16 %v394
        %v491 = vunpack.c.l.b16 %v395
        %v492 = vunpack.c.l.b16 %v396
        %v493 = vunpack.c.l.b16 %v397
        %v494 = vunpack.c.l.b16 %v398
        %v495 = vunpack.c.l.b16 %v399
        %v496 = vunpack.c.l.b16 %v400
        %v497 = vunpack.c.l.b16 %v401
        %v498 = vunpack.c.l.b16 %v402
        %v499 = vunpack.c.l.b16 %v403
        %v500 = vunpack.c.l.b16 %v404
        %v501 = vunpack.c.l.b16 %v405
        %v502 = vunpack.c.l.b16 %v406
        %v503 = vunpack.c.l.b16 %v407
        %v504 = vunpack.c.l.b16 %v408
        %v505 = vunpack.c.l.b16 %v409
        %v506 = vunpack.c.l.b16 %v410
        %v507 = vunpack.c.l.b16 %v411
        %v508 = vunpack.c.l.b16 %v412
        %v509 = vunpack.c.l.b16 %v413
        %v510 = vunpack.c.l.b16 %v414
        %v511 = vunpack.c.l.b16 %v415
        %v512 = vunpack.c.l.b16 %v416
        %v513 = vunpack.c.l.b16 %v417
        %v514 = vunpack.c.l.b16 %v418
        %v515 = vunpack.c.l.b16 %v419
        %v516 = vunpack.c.l.b16 %v420
        %v517 = vunpack.c.l.b16 %v421
        %v518 = vunpack.c.l.b16 %v422
        %v519 = vunpack.c.l.b16 %v423
        %v520 = vpack.c.b16 %v489, %v488
        %v521 = vpack.c.b16 %v491, %v490
        %v522 = vpack.c.b16 %v493, %v492
        %v523 = vpack.c.b16 %v495, %v494
        %v524 = vpack.c.b16 %v497, %v496
        %v525 = vpack.c.b16 %v499, %v498
        %v526 = vpack.c.b16 %v501, %v500
        %v527 = vpack.c.b16 %v503, %v502
        %v528 = vpack.c.b16 %v505, %v504
        %v529 = vpack.c.b16 %v507, %v506
        %v530 = vpack.c.b16 %v509, %v508
        %v531 = vpack.c.b16 %v511, %v510
        %v532 = vpack.c.b16 %v513, %v512
        %v533 = vpack.c.b16 %v515, %v514
        %v534 = vpack.c.b16 %v517, %v516
        %v535 = vpack.c.b16 %v519, %v518
        %552 = vmatprep.subr.bf16.mxu0 0
        %553 = vmatpush1.bf16.msra.mxu0 %v527
        %554 = vmatprep.subr.bf16.mxu0 0
        %555 = vmatpush1.bf16.msra.mxu0 %v526
        %556 = vmatprep.subr.bf16.mxu0 0
        %557 = vmatpush1.bf16.msra.mxu0 %v525
        %558 = vmatprep.subr.bf16.mxu0 0
        %559 = vmatpush1.bf16.msra.mxu0 %v524
        %560 = vmatprep.subr.bf16.mxu0 0
        %561 = vmatpush1.bf16.msra.mxu0 %v523
        %562 = vmatprep.subr.bf16.mxu0 0
        %563 = vmatpush1.bf16.msra.mxu0 %v522
        %564 = vmatprep.subr.bf16.mxu0 0
        %565 = vmatpush1.bf16.msra.mxu0 %v521
        %566 = vmatprep.subr.bf16.mxu0 0
        %567 = vmatpush1.bf16.msra.mxu0 %v520
        %568 = vmatprep.subr.bf16.mxu0 0
        %569 = vmatpush2.bf16.msra.mxu0 %v535
        %570 = vmatprep.subr.bf16.mxu0 0
        %571 = vmatpush2.bf16.msra.mxu0 %v534
        %572 = vmatprep.subr.bf16.mxu0 0
        %573 = vmatpush2.bf16.msra.mxu0 %v533
        %574 = vmatprep.subr.bf16.mxu0 0
        %575 = vmatpush2.bf16.msra.mxu0 %v532
        %576 = vmatprep.subr.bf16.mxu0 0
        %577 = vmatpush2.bf16.msra.mxu0 %v531
        %578 = vmatprep.subr.bf16.mxu0 0
        %579 = vmatpush2.bf16.msra.mxu0 %v530
        %580 = vmatprep.subr.bf16.mxu0 0
        %581 = vmatpush2.bf16.msra.mxu0 %v529
        %582 = vmatprep.subr.bf16.mxu0 0
        %583 = vmatpush2.bf16.msra.mxu0 %v528
        %584 = vmatprep.mubr.bf16.mxu0 %v448
        %585 = vmatmul.mubr.bf16.gmra.mxu0 %v432
        %v586 = vpop.f32.mrf.mxu0
        %v587 = vadd.f32 0.0, %v586
        %v588 = vpop.f32.mrf.mxu0
        %v589 = vpop.f32.mrf.mxu0
        %v590 = vadd.f32 0.0, %v589
        %v591 = vpop.f32.mrf.mxu0
        %592 = vmatprep.mubr.bf16.mxu0 %v449
        %593 = vmatmul.mubr.bf16.gmra.mxu0 %v433
        %v594 = vpop.f32.mrf.mxu0
        %v595 = vadd.f32 0.0, %v594
        %v596 = vpop.f32.mrf.mxu0
        %v597 = vpop.f32.mrf.mxu0
        %v598 = vadd.f32 0.0, %v597
        %v599 = vpop.f32.mrf.mxu0
        %600 = vmatprep.mubr.bf16.mxu0 %v450
        %601 = vmatmul.mubr.bf16.gmra.mxu0 %v434
        %v602 = vpop.f32.mrf.mxu0
        %v603 = vadd.f32 0.0, %v602
        %v604 = vpop.f32.mrf.mxu0
        %v605 = vpop.f32.mrf.mxu0
        %v606 = vadd.f32 0.0, %v605
        %v607 = vpop.f32.mrf.mxu0
        %608 = vmatprep.mubr.bf16.mxu0 %v451
        %609 = vmatmul.mubr.bf16.gmra.mxu0 %v435
        %v610 = vpop.f32.mrf.mxu0
        %v611 = vadd.f32 0.0, %v610
        %v612 = vpop.f32.mrf.mxu0
        %v613 = vpop.f32.mrf.mxu0
        %v614 = vadd.f32 0.0, %v613
        %v615 = vpop.f32.mrf.mxu0
        %616 = vmatprep.mubr.bf16.mxu0 %v452
        %617 = vmatmul.mubr.bf16.gmra.mxu0 %v436
        %v618 = vpop.f32.mrf.mxu0
        %v619 = vadd.f32 0.0, %v618
        %v620 = vpop.f32.mrf.mxu0
        %v621 = vpop.f32.mrf.mxu0
        %v622 = vadd.f32 0.0, %v621
        %v623 = vpop.f32.mrf.mxu0
        %624 = vmatprep.mubr.bf16.mxu0 %v453
        %625 = vmatmul.mubr.bf16.gmra.mxu0 %v437
        %v626 = vpop.f32.mrf.mxu0
        %v627 = vadd.f32 0.0, %v626
        %v628 = vpop.f32.mrf.mxu0
        %v629 = vpop.f32.mrf.mxu0
        %v630 = vadd.f32 0.0, %v629
        %v631 = vpop.f32.mrf.mxu0
        %632 = vmatprep.mubr.bf16.mxu0 %v454
        %633 = vmatmul.mubr.bf16.gmra.mxu0 %v438
        %v634 = vpop.f32.mrf.mxu0
        %v635 = vadd.f32 0.0, %v634
        %v636 = vpop.f32.mrf.mxu0
        %v637 = vpop.f32.mrf.mxu0
        %v638 = vadd.f32 0.0, %v637
        %v639 = vpop.f32.mrf.mxu0
        %640 = vmatprep.mubr.bf16.mxu0 %v455
        %641 = vmatmul.mubr.bf16.gmra.mxu0 %v439
        %v642 = vpop.f32.mrf.mxu0
        %v643 = vadd.f32 0.0, %v642
        %v644 = vpop.f32.mrf.mxu0
        %v645 = vpop.f32.mrf.mxu0
        %v646 = vadd.f32 0.0, %v645
        %v647 = vpop.f32.mrf.mxu0
        %648 = vdwg.mxu0
        %649 = vst [vmem:[%s170] sm:$0xff] %v587
        %650 = vst [vmem:[%s170 + $0x8] sm:$0xff] %v590
        %651 = vst [vmem:[%s170 + $0x10] sm:$0xff] %v595
        %652 = vst [vmem:[%s170 + $0x18] sm:$0xff] %v598
        %653 = vst [vmem:[%s170 + $0x20] sm:$0xff] %v603
        %654 = vst [vmem:[%s170 + $0x28] sm:$0xff] %v606
        %655 = vst [vmem:[%s170 + $0x30] sm:$0xff] %v611
        %656 = vst [vmem:[%s170 + $0x38] sm:$0xff] %v614
        %657 = vst [vmem:[%s170 + $0x40] sm:$0xff] %v619
        %658 = vst [vmem:[%s170 + $0x48] sm:$0xff] %v622
        %659 = vst [vmem:[%s170 + $0x50] sm:$0xff] %v627
        %660 = vst [vmem:[%s170 + $0x58] sm:$0xff] %v630
        %661 = vst [vmem:[%s170 + $0x60] sm:$0xff] %v635
        %662 = vst [vmem:[%s170 + $0x68] sm:$0xff] %v638
        %663 = vst [vmem:[%s170 + $0x70] sm:$0xff] %v643
        %664 = vst [vmem:[%s170 + $0x78] sm:$0xff] %v646
        %s665 = sand.u32 %s75, 1
        %s666 = scalar_lea.sflag [#allocation4], %s665
        %s667 = sand.u32 %s75, 1
        %s668 = smul.addr %s667, 128
        %s669 = scalar_lea.vmem [#allocation7], %s668
        // Predicated region
        $region37: #{tpu_custom_call.1} parent=27 // pred_check
          %p670 = pneg %p85
        $region38: #{tpu_custom_call.1} parent=27 // pred_check_branch
          %672 = sbr.rel (%p670) target = $region40
        $region39: #{tpu_custom_call.1} parent=27 // pred_region
          %s673 = smul.u32 16, %s20
          %s675 = ssub.s32 2048, 2048
          %676 = vsyncadd %s666, %s675
          %s677 = smul.addr %s673, 128
          %s678 = scalar_lea.hbm %s2, %s677
          %s679 = sshll.u32 %s669, 4
          %s680 = int_to_ptr.vmem [resolvable:$true] %s679
          %685 = dma.vmem_to_hbm [thread:$0]  %s680, 2048, %s678, %s666, 128, 128, 8
        $region40: #{tpu_custom_call.1} parent=27 // pred_fallthru
          _
      $region28: #{tpu_custom_call.1} parent=5 // pred_fallthru
        _
      %p686 = scmp.le.s32.totalorder 2, %s15
      // Predicated region
      $region41: #{tpu_custom_call.1} parent=5 // pred_check
        %p687 = pneg %p686
      $region42: #{tpu_custom_call.1} parent=5 // pred_check_branch
        %689 = sbr.rel (%p687) target = $region44
      $region43: #{tpu_custom_call.1} parent=5 // pred_region
        %s690 = ssub.s32 %s15, 2
        // Predicated region
        $region45: #{tpu_custom_call.1} parent=43 // pred_check
          %p691 = pneg %p91
        $region46: #{tpu_custom_call.1} parent=43 // pred_check_branch
          %693 = sbr.rel (%p691) target = $region48
        $region47: #{tpu_custom_call.1} parent=43 // pred_region
          %s694 = sand.u32 %s76, 1
          %s695 = scalar_lea.sflag [#allocation4], %s694
          %s696 = sand.u32 %s76, 1
          %s697 = smul.addr %s696, 128
          %s698 = scalar_lea.vmem [#allocation7], %s697
          %699 = dma.done %s695, 2048
        $region48: #{tpu_custom_call.1} parent=43 // pred_fallthru
          _
      $region44: #{tpu_custom_call.1} parent=5 // pred_fallthru
        _
    $region6: #{tpu_custom_call.1} parent=1 // loop_footer
      %s19 = sadd.s32 1, %s15
    $region7: #{tpu_custom_call.1} parent=1 // loop_footer_branch
      %14 = sbr.rel target = $region3
    $region8: #{tpu_custom_call.1} parent=1 // loop_exit
      _
    %700 = vsyncpa [#allocation3], 1
    %s701 = scalar_lea.sflag [#allocation3], 1
    %702 = vsyncpa %s701, 1
    %703 = vsyncpa [#allocation6], 1
    %704 = vsyncpa [#allocation4], 1
    %s705 = scalar_lea.sflag [#allocation4], 1
    %706 = vsyncpa %s705, 1

</llo_original>
